<compile_context>
chip_gen: v6e
topology: v6e:2x2x1
jax: 0.10.0
libtpu: 0.0.40
codegen_flags: <defaults>
</compile_context>

<pallas_src>
import functools

import jax
import jax.numpy as jnp
from jax import lax
from jax.experimental import pallas as pl
from jax.experimental.pallas import tpu as pltpu

LANES = 128
SUBLANES = 8
_TARGET_BLOCK_BYTES = 2 << 20  # ~2 MiB of DMA per input block, dtype-independent


def _round_up(x, m):
    return ((x + m - 1) // m) * m


def _mse_kernel(p_ref, t_ref, o_ref, acc_ref, *, rows, tile_rows,
                blocks_per_split, need_mask):
    i = pl.program_id(1)

    @pl.when(i == 0)
    def _init():
        acc_ref[...] = jnp.zeros_like(acc_ref)

    d = p_ref[...].astype(jnp.float32) - t_ref[...].astype(jnp.float32)
    sq = d * d                                     # (tile_rows, 128) f32

    groups = tile_rows // SUBLANES

    def _accum(vals):
        # (tile_rows,128) -> (groups,8,128) is a pure retiling of the native
        # (8,128) vreg tiles, so the axis-0 reduce is vreg-wise VPU adds; the
        # cross-sublane/cross-lane reduce is deferred to the wrapper epilogue.
        acc_ref[...] += jnp.sum(vals.reshape(groups, SUBLANES, LANES), axis=0)

    if need_mask:
        # Only the block that straddles `rows` (and the fully-overhanging
        # clamped blocks of the last split, if any) pays for the mask.
        s = pl.program_id(0)
        row0 = (s * blocks_per_split + i) * tile_rows
        straddles = row0 + tile_rows > rows

        @pl.when(jnp.logical_not(straddles))
        def _fast():
            _accum(sq)

        @pl.when(straddles)
        def _masked():
            ridx = row0 + lax.broadcasted_iota(jnp.int32, (tile_rows, LANES), 0)
            _accum(jnp.where(ridx < rows, sq, 0.0))
    else:
        _accum(sq)

    @pl.when(i == pl.num_programs(1) - 1)
    def _fin():
        o_ref[...] = acc_ref[...]


def mse_loss(predict, target, reduction="mean", *, tile_rows=None,
             num_splits=1, input_buffers=2):
    """MSE loss (mean/sum of (predict-target)^2) as a Pallas TPU kernel.

    num_splits: leave at 1 on single-TensorCore chips (v5e/v6e).  On v7x pass
      num_splits=2 to shard the row-blocks across both TensorCores (the split
      axis is marked CORE_PARALLEL).
    tile_rows: rows of the (rows, 128) view per block; default is dtype-aware
      (~2 MiB of DMA per input block).  Raise (e.g. 8192 for f32) on v7x.
    input_buffers: input pipeline depth (2 = default double buffering).
    """
    assert predict.shape == target.shape, "predict/target must have same shape"
    n_elems = predict.size
    if reduction == "mean":
        scale = 1.0 / float(n_elems)
    elif reduction == "sum":
        scale = 1.0
    else:
        raise ValueError(f"unsupported reduction: {reduction}")

    p = predict.reshape(-1)
    t = target.reshape(-1)

    # Lane-dense (rows, 128) view.  For 128-aligned counts this is metadata-only.
    lane_pad = (-n_elems) % LANES
    if lane_pad:
        # TODO(synk): the rare non-128-aligned path still pays one extra HBM
        # read+write per tensor for this pad; a 1-D-blocked kernel with an
        # in-kernel lane mask would remove it.
        p = jnp.pad(p, (0, lane_pad))
        t = jnp.pad(t, (0, lane_pad))
    rows = (n_elems + lane_pad) // LANES
    p = p.reshape(rows, LANES)
    t = t.reshape(rows, LANES)

    itemsize = jnp.dtype(predict.dtype).itemsize
    if tile_rows is None:
        # dtype-aware so each block is ~_TARGET_BLOCK_BYTES of DMA:
        # 4096 rows for f32, 8192 for bf16, 16384 for 1-byte dtypes.
        tile_rows = max(SUBLANES, _TARGET_BLOCK_BYTES // (LANES * itemsize))
    tile_rows = _round_up(tile_rows, SUBLANES)

    # Block rows: multiple of 8 (sublane-aligned accumulator).  The last block
    # may overhang the array; the in-kernel straddle mask zeroes the overhang.
    tr = min(tile_rows, _round_up(rows, SUBLANES))
    nb = pl.cdiv(rows, tr)                      # total row-blocks
    num_splits = max(int(num_splits), 1)
    bps = pl.cdiv(nb, num_splits)               # row-blocks per split
    need_mask = (num_splits * bps * tr) != rows

    if num_splits > 1:
        # Clamp so the (possibly empty) overhang blocks of the last split
        # re-read a valid block; their contribution is masked to zero.
        def in_map(s, i):
            return (jnp.minimum(s * bps + i, nb - 1), 0)
    else:
        def in_map(s, i):
            return (i, 0)

    spec_kwargs = {}
    if input_buffers != 2:
        spec_kwargs["pipeline_mode"] = pl.Buffered(input_buffers)
    in_specs = [pl.BlockSpec((tr, LANES), in_map, **spec_kwargs),
                pl.BlockSpec((tr, LANES), in_map, **spec_kwargs)]

    block_bytes = tr * LANES * itemsize
    needed_vmem = 2 * max(2, input_buffers) * block_bytes + (2 << 20)
    vmem_limit = None if needed_vmem <= (16 << 20) else min(needed_vmem, 100 << 20)

    cost = pl.CostEstimate(
        flops=3 * n_elems,
        transcendentals=0,
        bytes_accessed=2 * n_elems * itemsize + num_splits * SUBLANES * LANES * 4,
    )

    split_sem = pltpu.CORE_PARALLEL if num_splits > 1 else pltpu.ARBITRARY

    partials = pl.pallas_call(
        functools.partial(_mse_kernel, rows=rows, tile_rows=tr,
                          blocks_per_split=bps, need_mask=need_mask),
        out_shape=jax.ShapeDtypeStruct((SUBLANES, num_splits * LANES), jnp.float32),
        grid_spec=pltpu.PrefetchScalarGridSpec(
            num_scalar_prefetch=0,
            grid=(num_splits, bps),
            in_specs=in_specs,
            out_specs=pl.BlockSpec((SUBLANES, LANES), lambda s, i: (0, s)),
            scratch_shapes=[pltpu.VMEM((SUBLANES, LANES), jnp.float32)],
        ),
        compiler_params=pltpu.CompilerParams(
            dimension_semantics=(split_sem, pltpu.ARBITRARY),
            vmem_limit_bytes=vmem_limit,
        ),
        cost_estimate=cost,
    )(p, t)

    # Tiny epilogue: fold the (8, num_splits*128) per-lane partials + scale.
    return jnp.sum(partials) * jnp.float32(scale)


if __name__ == "__main__":
    key = jax.random.PRNGKey(0)
    kp, kt, kr, ks = jax.random.split(key, 4)

    # Small NCHW-style regression tensors, consistent with the module spec.
    predict = jax.random.normal(kp, (2, 4, 16, 16), dtype=jnp.float32)
    target = jax.random.normal(kt, (2, 4, 16, 16), dtype=jnp.float32)

    loss_mean = jax.block_until_ready(mse_loss(predict, target, reduction="mean"))
    loss_sum = jax.block_until_ready(mse_loss(predict, target, reduction="sum"))
    ref_mean = jnp.mean(jnp.square(predict - target))
    ref_sum = jnp.sum(jnp.square(predict - target))
    assert jnp.allclose(loss_mean, ref_mean, rtol=1e-5, atol=1e-6), (loss_mean, ref_mean)
    assert jnp.allclose(loss_sum, ref_sum, rtol=1e-5, atol=1e-4), (loss_sum, ref_sum)

    # Small tile override -> multi-block grid, exercises accumulation across steps.
    loss_tiled = jax.block_until_ready(mse_loss(predict, target, tile_rows=8))
    assert jnp.allclose(loss_tiled, ref_mean, rtol=1e-5, atol=1e-6), (loss_tiled, ref_mean)

    # rows not a multiple of tile_rows -> exercises the straddle-masked block.
    ps = jax.random.normal(ks, (5, 4, 16, 16), dtype=jnp.float32)
    ts = ps * 0.25
    loss_s = jax.block_until_ready(mse_loss(ps, ts, reduction="mean", tile_rows=16))
    ref_s = jnp.mean(jnp.square(ps - ts))
    assert jnp.allclose(loss_s, ref_s, rtol=1e-5, atol=1e-6), (loss_s, ref_s)

    # Ragged element count (not a multiple of 128) exercises the padded path
    # and the beyond-extent (rows < 8) masked block.
    pr = jax.random.normal(kr, (3, 5, 7), dtype=jnp.float32)
    tg = pr * 0.5
    loss_r = jax.block_until_ready(mse_loss(pr, tg, reduction="mean"))
    ref_r = jnp.mean(jnp.square(pr - tg))
    assert jnp.allclose(loss_r, ref_r, rtol=1e-5, atol=1e-6), (loss_r, ref_r)

    # bf16 inputs stay bf16 through the DMA; the kernel accumulates in f32.
    pb = predict.astype(jnp.bfloat16)
    tb = target.astype(jnp.bfloat16)
    loss_b = jax.block_until_ready(mse_loss(pb, tb, reduction="mean"))
    ref_b = jnp.mean(jnp.square(pb.astype(jnp.float32) - tb.astype(jnp.float32)))
    assert jnp.allclose(loss_b, ref_b, rtol=1e-3, atol=1e-3), (loss_b, ref_b)

    print("KERNEL_OK")
</pallas_src>

<mosaic_0001>
module attributes {stable_mosaic.version = 11 : i64} {
  func.func @_mse_kernel(%arg0: i32, %arg1: i32, %arg2: memref<16x128xf32, #tpu.memory_space<vmem>>, %arg3: memref<16x128xf32, #tpu.memory_space<vmem>>, %arg4: memref<8x128xf32, #tpu.memory_space<vmem>>, %arg5: memref<8x128xf32, #tpu.memory_space<vmem>>) attributes {dimension_semantics = [#tpu.dimension_semantics<arbitrary>, #tpu.dimension_semantics<arbitrary>], iteration_bounds = array<i64: 1, 1>, scalar_prefetch = 0 : i64, scratch_operands = 1 : i64, tpu.core_type = #tpu.core_type<tc>, window_params = [{transform_indices = @transform_0, window_bounds = array<i64: 16, 128>}, {transform_indices = @transform_1, window_bounds = array<i64: 16, 128>}, {transform_indices = @transform_2, window_bounds = array<i64: 8, 128>}]} {
    %c0_i32 = arith.constant 0 : i32
    %0 = arith.cmpi eq, %arg1, %c0_i32 : i32
    %1 = arith.extui %0 : i1 to i32
    %c0_i32_0 = arith.constant 0 : i32
    %2 = arith.cmpi ne, %1, %c0_i32_0 : i32
    scf.if %2 {
      %cst_10 = arith.constant 0.000000e+00 : f32
      %15 = vector.broadcast %cst_10 : f32 to vector<8x128xf32>
      %c0_11 = arith.constant 0 : index
      %c0_12 = arith.constant 0 : index
      %16 = vector.load %arg5[%c0_11, %c0_12] : memref<8x128xf32, #tpu.memory_space<vmem>>, vector<8x128xf32>
      tpu.vector_store %arg5[%c0_11, %c0_12], %15 {strides = array<i32>} : memref<8x128xf32, #tpu.memory_space<vmem>>, vector<8x128xf32>,
    } else {
    }
    %c0 = arith.constant 0 : index
    %c0_1 = arith.constant 0 : index
    %3 = vector.load %arg2[%c0, %c0_1] : memref<16x128xf32, #tpu.memory_space<vmem>>, vector<16x128xf32>
    %c0_2 = arith.constant 0 : index
    %c0_3 = arith.constant 0 : index
    %4 = vector.load %arg3[%c0_2, %c0_3] : memref<16x128xf32, #tpu.memory_space<vmem>>, vector<16x128xf32>
    %5 = arith.subf %3, %4 : vector<16x128xf32>
    %6 = arith.mulf %5, %5 : vector<16x128xf32>
    %c0_4 = arith.constant 0 : index
    %c0_5 = arith.constant 0 : index
    %7 = vector.load %arg5[%c0_4, %c0_5] : memref<8x128xf32, #tpu.memory_space<vmem>>, vector<8x128xf32>
    %8 = vector.shape_cast %6 : vector<16x128xf32> to vector<2x8x128xf32>
    %cst = arith.constant dense<0.000000e+00> : vector<8x128xf32>
    %9 = vector.multi_reduction <add>, %8, %cst [0] : vector<2x8x128xf32> to vector<8x128xf32>
    %10 = arith.addf %7, %9 : vector<8x128xf32>
    %c0_6 = arith.constant 0 : index
    %c0_7 = arith.constant 0 : index
    %11 = vector.load %arg5[%c0_6, %c0_7] : memref<8x128xf32, #tpu.memory_space<vmem>>, vector<8x128xf32>
    tpu.vector_store %arg5[%c0_6, %c0_7], %10 {strides = array<i32>} : memref<8x128xf32, #tpu.memory_space<vmem>>, vector<8x128xf32>,
    %c0_i32_8 = arith.constant 0 : i32
    %12 = arith.cmpi eq, %arg1, %c0_i32_8 : i32
    %13 = arith.extui %12 : i1 to i32
    %c0_i32_9 = arith.constant 0 : i32
    %14 = arith.cmpi ne, %13, %c0_i32_9 : i32
    scf.if %14 {
      %c0_10 = arith.constant 0 : index
      %c0_11 = arith.constant 0 : index
      %15 = vector.load %arg5[%c0_10, %c0_11] : memref<8x128xf32, #tpu.memory_space<vmem>>, vector<8x128xf32>
      %c0_12 = arith.constant 0 : index
      %c0_13 = arith.constant 0 : index
      %16 = vector.load %arg4[%c0_12, %c0_13] : memref<8x128xf32, #tpu.memory_space<vmem>>, vector<8x128xf32>
      tpu.vector_store %arg4[%c0_12, %c0_13], %15 {strides = array<i32>} : memref<8x128xf32, #tpu.memory_space<vmem>>, vector<8x128xf32>,
    } else {
    }
    return
  }
  func.func @transform_0(%arg0: i32, %arg1: i32) -> (i32, i32) {
    %c0_i32 = arith.constant 0 : i32
    %c0_i32_0 = arith.constant 0 : i32
    return %arg1, %c0_i32 : i32, i32
  }
  func.func @transform_1(%arg0: i32, %arg1: i32) -> (i32, i32) {
    %c0_i32 = arith.constant 0 : i32
    %c0_i32_0 = arith.constant 0 : i32
    return %arg1, %c0_i32 : i32, i32
  }
  func.func @transform_2(%arg0: i32, %arg1: i32) -> (i32, i32) {
    %c0_i32 = arith.constant 0 : i32
    %c0_i32_0 = arith.constant 0 : i32
    return %c0_i32, %arg0 : i32, i32
  }
}

</mosaic_0001>

<llo_original>
// kernel: tpu_custom_call.1
$region0: #{tpu_custom_call.1}
  #allocation0 [shape = 'u32[]', space=smem, size = 0x4, offset = 0x4, fixed_abs, tag = 'smem constant byte address 0x4 - core index']
  #allocation1 [shape = 'u32[144,128]{1,0:T(1,128)}', space=vmem, size = 0x12000, scoped, tag = 'internal scratch']
  #allocation2 [shape = 'f32[8,128]{1,0:T(8,128)}', space=vmem, size = 0x1000, scoped, tag = 'scratch operand']
  %s0 = inlined_call_operand.hbm [shape: f32[16,128], index: 0, kind: input, shape index: {}]
  %s1 = inlined_call_operand.hbm [shape: f32[16,128], index: 1, kind: input, shape index: {}]
  %s2 = inlined_call_operand.hbm [shape: f32[8,128], index: 2, kind: output, shape index: {}]
  %s3 = sld [smem:[#allocation0]]
  $region34: #{tpu_custom_call.1} parent=0
    _
  %s5 = ssub.s32 1, %s3
  %s6 = scalar_select 0, %s5, %s3
  $region1: #{tpu_custom_call.1} parent=0
    #allocation3 [shape = 'u8[8192]{0}', space=vmem, size = 0x2000, scoped, tag = 'input window, operand 0, single buffered']
    #allocation4 [shape = 's32[1]{0}', space=sflag, size = 0x4, scoped, tag = 'scoped memory for tpu_custom_call.1']
    #allocation5 [shape = 's32[1]{0}', space=sflag, size = 0x4, scoped, tag = 'scoped memory for tpu_custom_call.1']
    #allocation6 [shape = 'u8[8192]{0}', space=vmem, size = 0x2000, scoped, tag = 'input window, operand 1, single buffered']
    #allocation7 [shape = 's32[1]{0}', space=sflag, size = 0x4, scoped, tag = 'scoped memory for tpu_custom_call.1']
    #allocation8 [shape = 'u8[4096]{0}', space=vmem, size = 0x1000, scoped, tag = 'output window, operand 0, single buffered']
    %7 = vsyncpa [#allocation4], 0
    %8 = vsyncpa [#allocation7], 0
    %9 = vsyncpa [#allocation5], 0
    // Predicated region
    $region2: #{tpu_custom_call.1} parent=1 // pred_check
      _
    $region3: #{tpu_custom_call.1} parent=1 // pred_check_branch
      %11 = sbr.rel (0) target = $region5
    $region4: #{tpu_custom_call.1} parent=1 // pred_region
      %s13 = ssub.s32 256, 256
      %14 = vsyncadd [#allocation4], %s13
      %s15 = sshll.u32 [#allocation3], 4
      %s16 = int_to_ptr.vmem [resolvable:$true] %s15
      %21 = dma.hbm_to_vmem [thread:$0]  %s0, 256, %s16, [#allocation4], 128, 128, 8
    $region5: #{tpu_custom_call.1} parent=1 // pred_fallthru
      _
    // Predicated region
    $region6: #{tpu_custom_call.1} parent=1 // pred_check
      _
    $region7: #{tpu_custom_call.1} parent=1 // pred_check_branch
      %23 = sbr.rel (0) target = $region9
    $region8: #{tpu_custom_call.1} parent=1 // pred_region
      %s25 = ssub.s32 256, 256
      %26 = vsyncadd [#allocation7], %s25
      %s27 = sshll.u32 [#allocation6], 4
      %s28 = int_to_ptr.vmem [resolvable:$true] %s27
      %33 = dma.hbm_to_vmem [thread:$0]  %s1, 256, %s28, [#allocation7], 128, 128, 8
    $region9: #{tpu_custom_call.1} parent=1 // pred_fallthru
      _
    // Predicated region
    $region10: #{tpu_custom_call.1} parent=1 // pred_check
      _
    $region11: #{tpu_custom_call.1} parent=1 // pred_check_branch
      %35 = sbr.rel (0) target = $region13
    $region12: #{tpu_custom_call.1} parent=1 // pred_region
      %36 = dma.done [#allocation4], 256
    $region13: #{tpu_custom_call.1} parent=1 // pred_fallthru
      _
    // Predicated region
    $region14: #{tpu_custom_call.1} parent=1 // pred_check
      _
    $region15: #{tpu_custom_call.1} parent=1 // pred_check_branch
      %38 = sbr.rel (0) target = $region17
    $region16: #{tpu_custom_call.1} parent=1 // pred_region
      %39 = dma.done [#allocation7], 256
    $region17: #{tpu_custom_call.1} parent=1 // pred_fallthru
      _
    %p40 = scmp.eq.s32.totalorder 0, 0
    // Predicated region
    $region18: #{tpu_custom_call.1} parent=1 // pred_check
      %p41 = pneg %p40
    $region19: #{tpu_custom_call.1} parent=1 // pred_check_branch
      %43 = sbr.rel (%p41) target = $region21
    $region20: #{tpu_custom_call.1} parent=1 // pred_region
      %44 = vst [vmem:[#allocation2] sm:$0xff] 0.0
    $region21: #{tpu_custom_call.1} parent=1 // pred_fallthru
      _
    %v45 = vld [vmem:[#allocation3] sm:$0xff]
    %v46 = vld [vmem:[#allocation3 + $0x8] sm:$0xff]
    %v47 = vld [vmem:[#allocation6] sm:$0xff]
    %v48 = vld [vmem:[#allocation6 + $0x8] sm:$0xff]
    %v49 = vsub.f32 %v45, %v47
    %v50 = vsub.f32 %v46, %v48
    %v51 = vmul.f32 %v49, %v49
    %v52 = vmul.f32 %v50, %v50
    %v53 = vld [vmem:[#allocation2] sm:$0xff]
    %v54 = vadd.f32 %v51, %v52
    %v55 = vadd.f32 %v53, %v54
    %56 = vst [vmem:[#allocation2] sm:$0xff] %v55
    // Predicated region
    $region22: #{tpu_custom_call.1} parent=1 // pred_check
      %p57 = pneg %p40
    $region23: #{tpu_custom_call.1} parent=1 // pred_check_branch
      %59 = sbr.rel (%p57) target = $region25
    $region24: #{tpu_custom_call.1} parent=1 // pred_region
      %v60 = vld [vmem:[#allocation2] sm:$0xff]
      %61 = vst [vmem:[#allocation8] sm:$0xff] %v60
    $region25: #{tpu_custom_call.1} parent=1 // pred_fallthru
      _
    // Predicated region
    $region26: #{tpu_custom_call.1} parent=1 // pred_check
      _
    $region27: #{tpu_custom_call.1} parent=1 // pred_check_branch
      %63 = sbr.rel (0) target = $region29
    $region28: #{tpu_custom_call.1} parent=1 // pred_region
      %s65 = ssub.s32 128, 128
      %66 = vsyncadd [#allocation5], %s65
      %s68 = sshll.u32 [#allocation8], 4
      %s69 = int_to_ptr.vmem [resolvable:$true] %s68
      %71 = dma.vmem_to_hbm [thread:$0]  %s69, 128, %s2, [#allocation5]
    $region29: #{tpu_custom_call.1} parent=1 // pred_fallthru
      _
    // Predicated region
    $region30: #{tpu_custom_call.1} parent=1 // pred_check
      _
    $region31: #{tpu_custom_call.1} parent=1 // pred_check_branch
      %73 = sbr.rel (0) target = $region33
    $region32: #{tpu_custom_call.1} parent=1 // pred_region
      %74 = dma.done [#allocation5], 128
    $region33: #{tpu_custom_call.1} parent=1 // pred_fallthru
      _
    %75 = vsyncpa [#allocation4], 1
    %76 = vsyncpa [#allocation7], 1
    %77 = vsyncpa [#allocation5], 1

</llo_original>
